<compile_context>
chip_gen: v6e
topology: v6e:2x2x1
jax: 0.10.0
libtpu: 0.0.40
codegen_flags: <defaults>
</compile_context>

<pallas_src>
import functools
import math

import jax
import jax.numpy as jnp
import numpy as np
from jax.experimental import pallas as pl
from jax.experimental.pallas import tpu as pltpu


def _round_up(x, m):
    return ((x + m - 1) // m) * m


def _make_kernel(process_cmd, has_prev, needs_norm, eps):
    """Builds a fused kernel for the static command string."""

    def kernel(*refs):
        idx = 0
        prev_ref = None
        if has_prev:
            prev_ref = refs[idx]
            idx += 1
        out_ref = refs[idx]
        idx += 1
        gamma_ref = beta_ref = None
        if needs_norm:
            gamma_ref = refs[idx]
            beta_ref = refs[idx + 1]
            idx += 2
        y_ref = refs[idx]

        x = out_ref[...].astype(jnp.float32)          # (TM, H)
        for cmd in process_cmd:                       # static Python loop
            if cmd == "a":
                if has_prev:
                    x = x + prev_ref[...].astype(jnp.float32)
            elif cmd == "n":
                mu = jnp.mean(x, axis=-1, keepdims=True)
                var = jnp.mean(jnp.square(x - mu), axis=-1, keepdims=True)
                x = (x - mu) * jax.lax.rsqrt(var + eps)        # EUP rsqrt
                x = (x * gamma_ref[...].astype(jnp.float32)
                     + beta_ref[...].astype(jnp.float32))
            elif cmd == "d":
                # dropout_rate == 0 -> identity.
                # TODO(synk): dropout with rate > 0 (needs pltpu PRNG) not implemented.
                pass
        y_ref[...] = x.astype(y_ref.dtype)

    return kernel


def post_process_layer_pallas(prev_out, out, gamma, beta, *,
                              process_cmd="an", dropout_rate=0.0,
                              eps=1e-5, block_rows=128):
    """Fused residual-add + LayerNorm (+ identity dropout).

    prev_out : (..., H) or None
    out      : (..., H)
    gamma    : (H,)   LayerNorm weight
    beta     : (H,)   LayerNorm bias
    Returns  : same shape/dtype as `out`.
    """
    del dropout_rate  # 0 in this config -> identity
    orig_shape = out.shape
    H = orig_shape[-1]
    rows = int(np.prod(orig_shape[:-1]))

    has_prev = ("a" in process_cmd) and (prev_out is not None)
    needs_norm = "n" in process_cmd
    if needs_norm:
        assert gamma.shape[-1] == H and beta.shape[-1] == H, \
            "LayerNorm affine params must match hidden size"

    out2 = out.reshape(rows, H)
    prev2 = prev_out.reshape(rows, H) if has_prev else None

    # Row tile: big enough to amortize per-step overhead, multiple of 8 sublanes.
    tm = block_rows if rows >= block_rows else _round_up(rows, 8)
    padded_rows = _round_up(rows, tm)
    if padded_rows != rows:
        pad = padded_rows - rows
        out2 = jnp.pad(out2, ((0, pad), (0, 0)))
        if has_prev:
            prev2 = jnp.pad(prev2, ((0, pad), (0, 0)))

    grid = (padded_rows // tm,)
    row_spec = pl.BlockSpec((tm, H), lambda i: (i, 0))
    vec_spec = pl.BlockSpec((1, H), lambda i: (0, 0))

    in_specs = []
    call_args = []
    if has_prev:
        in_specs.append(row_spec)
        call_args.append(prev2)
    in_specs.append(row_spec)
    call_args.append(out2)
    if needs_norm:
        in_specs += [vec_spec, vec_spec]
        call_args += [gamma.reshape(1, H), beta.reshape(1, H)]

    # VMEM budget: double-buffered row tiles (inputs + output) + affine params,
    # with generous headroom; stays well under v7x's 64 MiB physical VMEM.
    itemsize = 4
    n_row_tiles = (2 if has_prev else 1) + 1
    needed = 2 * n_row_tiles * tm * H * itemsize + 4 * H * itemsize
    vmem_limit = min(max(4 * needed, 4 << 20), 48 << 20)

    n_norm_flops = 9 * rows * H if needs_norm else 0
    cost = pl.CostEstimate(
        flops=(rows * H if has_prev else 0) + n_norm_flops,
        transcendentals=rows if needs_norm else 0,
        bytes_accessed=(n_row_tiles + 0) * rows * H * itemsize
                       + rows * H * itemsize + 2 * H * itemsize,
    )

    kernel = _make_kernel(process_cmd, has_prev, needs_norm, eps)

    y = pl.pallas_call(
        kernel,
        out_shape=jax.ShapeDtypeStruct((padded_rows, H), out.dtype),
        grid_spec=pltpu.PrefetchScalarGridSpec(
            num_scalar_prefetch=0,
            grid=grid,
            in_specs=in_specs,
            out_specs=row_spec,
        ),
        compiler_params=pltpu.CompilerParams(
            dimension_semantics=("parallel",),
            vmem_limit_bytes=vmem_limit,
        ),
        cost_estimate=cost,
    )(*call_args)

    if padded_rows != rows:
        y = y[:rows]
    return y.reshape(orig_shape)


def _reference(prev_out, out, gamma, beta, process_cmd, eps=1e-5):
    """Pure-JAX mirror of the PyTorch forward."""
    x = out
    for cmd in process_cmd:
        if cmd == "a":
            x = x + prev_out if prev_out is not None else x
        elif cmd == "n":
            mu = jnp.mean(x, axis=-1, keepdims=True)
            var = jnp.mean((x - mu) ** 2, axis=-1, keepdims=True)
            x = (x - mu) / jnp.sqrt(var + eps) * gamma + beta
        elif cmd == "d":
            pass  # dropout_rate == 0
    return x


if __name__ == "__main__":
    # Small shapes consistent with the module: (batch, seq, hidden).
    # hidden is kept a multiple of 128 so the output lane dim is dense.
    B, S, Hs = 4, 64, 128
    process_cmd = "an"          # residual add, then LayerNorm (dropout rate 0)

    key = jax.random.PRNGKey(0)
    k0, k1, k2, k3 = jax.random.split(key, 4)
    prev_out = jax.random.normal(k0, (B, S, Hs), jnp.float32)
    out = jax.random.normal(k1, (B, S, Hs), jnp.float32)
    gamma = 1.0 + 0.1 * jax.random.normal(k2, (Hs,), jnp.float32)
    beta = 0.1 * jax.random.normal(k3, (Hs,), jnp.float32)

    y = post_process_layer_pallas(prev_out, out, gamma, beta,
                                  process_cmd=process_cmd, dropout_rate=0.0)
    y = jax.block_until_ready(y)

    ref = _reference(prev_out, out, gamma, beta, process_cmd)
    np.testing.assert_allclose(np.asarray(y), np.asarray(ref),
                               rtol=1e-5, atol=1e-5)
    print("KERNEL_OK")
</pallas_src>

<mosaic_0001>
module attributes {stable_mosaic.version = 11 : i64} {
  func.func @kernel(%arg0: i32, %arg1: memref<128x128xf32, #tpu.memory_space<vmem>>, %arg2: memref<128x128xf32, #tpu.memory_space<vmem>>, %arg3: memref<1x128xf32, #tpu.memory_space<vmem>>, %arg4: memref<1x128xf32, #tpu.memory_space<vmem>>, %arg5: memref<128x128xf32, #tpu.memory_space<vmem>>) attributes {dimension_semantics = [#tpu.dimension_semantics<parallel>], iteration_bounds = array<i64: 2>, scalar_prefetch = 0 : i64, scratch_operands = 0 : i64, tpu.core_type = #tpu.core_type<tc>, window_params = [{transform_indices = @transform_0, window_bounds = array<i64: 128, 128>}, {transform_indices = @transform_1, window_bounds = array<i64: 128, 128>}, {pipeline_mode = #tpu.pipeline_mode<synchronous>, transform_indices = @transform_2, window_bounds = array<i64: 1, 128>}, {pipeline_mode = #tpu.pipeline_mode<synchronous>, transform_indices = @transform_3, window_bounds = array<i64: 1, 128>}, {transform_indices = @transform_4, window_bounds = array<i64: 128, 128>}]} {
    %c0 = arith.constant 0 : index
    %c0_0 = arith.constant 0 : index
    %0 = vector.load %arg2[%c0, %c0_0] : memref<128x128xf32, #tpu.memory_space<vmem>>, vector<128x128xf32>
    %c0_1 = arith.constant 0 : index
    %c0_2 = arith.constant 0 : index
    %1 = vector.load %arg1[%c0_1, %c0_2] : memref<128x128xf32, #tpu.memory_space<vmem>>, vector<128x128xf32>
    %2 = arith.addf %0, %1 : vector<128x128xf32>
    %cst = arith.constant dense<0.000000e+00> : vector<128xf32>
    %3 = vector.multi_reduction <add>, %2, %cst [1] : vector<128x128xf32> to vector<128xf32>
    %4 = vector.shape_cast %3 : vector<128xf32> to vector<128x1xf32>
    %cst_3 = arith.constant 1.280000e+02 : f32
    %5 = vector.broadcast %cst_3 : f32 to vector<128x1xf32>
    %6 = arith.divf %4, %5 : vector<128x1xf32>
    %7 = vector.broadcast %6 : vector<128x1xf32> to vector<128x128xf32>
    %8 = arith.subf %2, %7 : vector<128x128xf32>
    %9 = arith.mulf %8, %8 : vector<128x128xf32>
    %cst_4 = arith.constant dense<0.000000e+00> : vector<128xf32>
    %10 = vector.multi_reduction <add>, %9, %cst_4 [1] : vector<128x128xf32> to vector<128xf32>
    %11 = vector.shape_cast %10 : vector<128xf32> to vector<128x1xf32>
    %cst_5 = arith.constant 1.280000e+02 : f32
    %12 = vector.broadcast %cst_5 : f32 to vector<128x1xf32>
    %13 = arith.divf %11, %12 : vector<128x1xf32>
    %14 = vector.broadcast %6 : vector<128x1xf32> to vector<128x128xf32>
    %15 = arith.subf %2, %14 : vector<128x128xf32>
    %cst_6 = arith.constant 9.99999974E-6 : f32
    %16 = vector.broadcast %cst_6 : f32 to vector<128x1xf32>
    %17 = arith.addf %13, %16 : vector<128x1xf32>
    %18 = math.rsqrt %17 : vector<128x1xf32>
    %19 = vector.broadcast %18 : vector<128x1xf32> to vector<128x128xf32>
    %20 = arith.mulf %15, %19 : vector<128x128xf32>
    %c0_7 = arith.constant 0 : index
    %c0_8 = arith.constant 0 : index
    %21 = vector.load %arg3[%c0_7, %c0_8] : memref<1x128xf32, #tpu.memory_space<vmem>>, vector<1x128xf32>
    %22 = vector.broadcast %21 : vector<1x128xf32> to vector<128x128xf32>
    %23 = arith.mulf %20, %22 : vector<128x128xf32>
    %c0_9 = arith.constant 0 : index
    %c0_10 = arith.constant 0 : index
    %24 = vector.load %arg4[%c0_9, %c0_10] : memref<1x128xf32, #tpu.memory_space<vmem>>, vector<1x128xf32>
    %25 = vector.broadcast %24 : vector<1x128xf32> to vector<128x128xf32>
    %26 = arith.addf %23, %25 : vector<128x128xf32>
    %c0_11 = arith.constant 0 : index
    %c0_12 = arith.constant 0 : index
    %27 = vector.load %arg5[%c0_11, %c0_12] : memref<128x128xf32, #tpu.memory_space<vmem>>, vector<128x128xf32>
    tpu.vector_store %arg5[%c0_11, %c0_12], %26 {strides = array<i32>} : memref<128x128xf32, #tpu.memory_space<vmem>>, vector<128x128xf32>,
    return
  }
  func.func @transform_0(%arg0: i32) -> (i32, i32) {
    %c0_i32 = arith.constant 0 : i32
    %c0_i32_0 = arith.constant 0 : i32
    return %arg0, %c0_i32 : i32, i32
  }
  func.func @transform_1(%arg0: i32) -> (i32, i32) {
    %c0_i32 = arith.constant 0 : i32
    %c0_i32_0 = arith.constant 0 : i32
    return %arg0, %c0_i32 : i32, i32
  }
  func.func @transform_2(%arg0: i32) -> (i32, i32) {
    %c0_i32 = arith.constant 0 : i32
    %c0_i32_0 = arith.constant 0 : i32
    %c0_i32_1 = arith.constant 0 : i32
    return %c0_i32, %c0_i32_0 : i32, i32
  }
  func.func @transform_3(%arg0: i32) -> (i32, i32) {
    %c0_i32 = arith.constant 0 : i32
    %c0_i32_0 = arith.constant 0 : i32
    %c0_i32_1 = arith.constant 0 : i32
    return %c0_i32, %c0_i32_0 : i32, i32
  }
  func.func @transform_4(%arg0: i32) -> (i32, i32) {
    %c0_i32 = arith.constant 0 : i32
    %c0_i32_0 = arith.constant 0 : i32
    return %arg0, %c0_i32 : i32, i32
  }
}

</mosaic_0001>

<llo_original>
// kernel: tpu_custom_call.1
$region0: #{tpu_custom_call.1}
  #allocation0 [shape = 'u32[]', space=smem, size = 0x4, offset = 0x4, fixed_abs, tag = 'smem constant byte address 0x4 - core index']
  #allocation1 [shape = 'u32[144,128]{1,0:T(1,128)}', space=vmem, size = 0x12000, scoped, tag = 'internal scratch']
  %s0 = inlined_call_operand.hbm [shape: f32[256,128], index: 0, kind: input, shape index: {}]
  %s1 = inlined_call_operand.hbm [shape: f32[256,128], index: 1, kind: input, shape index: {}]
  %s2 = inlined_call_operand.vmem [shape: f32[1,128], index: 2, kind: input, shape index: {}]
  %s3 = inlined_call_operand.vmem [shape: f32[1,128], index: 3, kind: input, shape index: {}]
  %s4 = inlined_call_operand.hbm [shape: f32[256,128], index: 4, kind: output, shape index: {}]
  %s5 = sld [smem:[#allocation0]]
  $region57: #{tpu_custom_call.1} parent=0
    _
  %s7 = ssub.s32 1, %s5
  %s8 = scalar_select 0, %s7, %s5
  $region1: #{tpu_custom_call.1} parent=0
    #allocation2 [shape = 'u8[131072]{0}', space=vmem, size = 0x20000, scoped, tag = 'input window, operand 0']
    #allocation3 [shape = 's32[2]{0}', space=sflag, size = 0x8, scoped, tag = 'scoped memory for tpu_custom_call.1']
    #allocation4 [shape = 's32[2]{0}', space=sflag, size = 0x8, scoped, tag = 'scoped memory for tpu_custom_call.1']
    #allocation5 [shape = 'u8[131072]{0}', space=vmem, size = 0x20000, scoped, tag = 'input window, operand 1']
    #allocation6 [shape = 's32[2]{0}', space=sflag, size = 0x8, scoped, tag = 'scoped memory for tpu_custom_call.1']
    #allocation7 [shape = 'u8[131072]{0}', space=vmem, size = 0x20000, scoped, tag = 'output window, operand 0']
    %9 = vsyncpa [#allocation3], 0
    %s10 = scalar_lea.sflag [#allocation3], 1
    %11 = vsyncpa %s10, 0
    %12 = vsyncpa [#allocation6], 0
    %s13 = scalar_lea.sflag [#allocation6], 1
    %14 = vsyncpa %s13, 0
    %15 = vsyncpa [#allocation4], 0
    %s16 = scalar_lea.sflag [#allocation4], 1
    %17 = vsyncpa %s16, 0
    loop: start=0, step=1, limit=4
    $region2: #{tpu_custom_call.1} parent=1 // loop_pre_header
      _
    $region3: #{tpu_custom_call.1} parent=1 // loop_header
      %s19 = sphi 0, %s23
      %p20 = scmp.ge.s32.totalorder %s19, 4
      %s29 = sphi 0, %s31
      %s32 = sphi 0, %s29
      %s33 = sphi 0, %s32
      %s49 = sphi 0, %s33
      %s55 = sphi 0, %s57
      %s58 = sphi 0, %s55
      %s59 = sphi 0, %s58
      %s75 = sphi 0, %s59
      %s79 = sphi 0, %s79
      %s81 = sphi 0, %s79
      %s82 = sphi 0, %s81
      %s96 = sphi 0, %s82
      %s100 = sphi 0, %s100
      %s102 = sphi 0, %s100
      %s103 = sphi 0, %s102
      %s117 = sphi 0, %s103
      %s123 = sphi 0, %s125
      %s126 = sphi 0, %s123
      %s127 = sphi 0, %s126
      %s143 = sphi 0, %s127
    $region4: #{tpu_custom_call.1} parent=1 // loop_header_branch
      %22 = sbr.rel (%p20) target = $region8
    $region5: #{tpu_custom_call.1} parent=1 // loop_body
      %s24 = ssub.s32 %s19, 1
      %s25 = ssub.s32 %s19, 2
      %s26 = sadd.s32 %s19, 1
      %s27 = ssub.s32 %s19, %s26
      %p28 = scmp.eq.s32.totalorder %s27, 0
      %s30 = sadd.s32 %s29, 1
      %s31 = scalar_select %p28, %s29, %s30
      %p34 = pneg %p28
      %p35 = scmp.eq.s32.totalorder %s19, 1
      %p36 = por %p34, %p35
      %p37 = scmp.ne.s32.totalorder %s29, %s32
      %p38 = scmp.eq.s32.totalorder %s19, 0
      %p39 = por %p37, %p38
      %p40 = scmp.ne.s32.totalorder %s29, %s32
      %p41 = scmp.eq.s32.totalorder %s24, 1
      %p42 = por %p40, %p41
      %p43 = scmp.ne.s32.totalorder %s32, %s33
      %p44 = scmp.eq.s32.totalorder %s24, 0
      %p45 = por %p43, %p44
      %p46 = scmp.ne.s32.totalorder %s32, %s33
      %p47 = scmp.eq.s32.totalorder %s25, 1
      %p48 = por %p46, %p47
      %p50 = scmp.ne.s32.totalorder %s33, %s49
      %p51 = scmp.eq.s32.totalorder %s25, 0
      %p52 = por %p50, %p51
      %s53 = ssub.s32 %s19, %s26
      %p54 = scmp.eq.s32.totalorder %s53, 0
      %s56 = sadd.s32 %s55, 1
      %s57 = scalar_select %p54, %s55, %s56
      %p60 = pneg %p54
      %p61 = scmp.eq.s32.totalorder %s19, 1
      %p62 = por %p60, %p61
      %p63 = scmp.ne.s32.totalorder %s55, %s58
      %p64 = scmp.eq.s32.totalorder %s19, 0
      %p65 = por %p63, %p64
      %p66 = scmp.ne.s32.totalorder %s55, %s58
      %p67 = scmp.eq.s32.totalorder %s24, 1
      %p68 = por %p66, %p67
      %p69 = scmp.ne.s32.totalorder %s58, %s59
      %p70 = scmp.eq.s32.totalorder %s24, 0
      %p71 = por %p69, %p70
      %p72 = scmp.ne.s32.totalorder %s58, %s59
      %p73 = scmp.eq.s32.totalorder %s25, 1
      %p74 = por %p72, %p73
      %p76 = scmp.ne.s32.totalorder %s59, %s75
      %p77 = scmp.eq.s32.totalorder %s25, 0
      %p78 = por %p76, %p77
      %s80 = sadd.s32 %s79, 1
      %p83 = scmp.eq.s32.totalorder %s19, 1
      %p84 = scmp.ne.s32.totalorder %s79, %s81
      %p85 = scmp.eq.s32.totalorder %s19, 0
      %p86 = por %p84, %p85
      %p87 = scmp.ne.s32.totalorder %s79, %s81
      %p88 = scmp.eq.s32.totalorder %s24, 1
      %p89 = por %p87, %p88
      %p90 = scmp.ne.s32.totalorder %s81, %s82
      %p91 = scmp.eq.s32.totalorder %s24, 0
      %p92 = por %p90, %p91
      %p93 = scmp.ne.s32.totalorder %s81, %s82
      %p94 = scmp.eq.s32.totalorder %s25, 1
      %p95 = por %p93, %p94
      %p97 = scmp.ne.s32.totalorder %s82, %s96
      %p98 = scmp.eq.s32.totalorder %s25, 0
      %p99 = por %p97, %p98
      %s101 = sadd.s32 %s100, 1
      %p104 = scmp.eq.s32.totalorder %s19, 1
      %p105 = scmp.ne.s32.totalorder %s100, %s102
      %p106 = scmp.eq.s32.totalorder %s19, 0
      %p107 = por %p105, %p106
      %p108 = scmp.ne.s32.totalorder %s100, %s102
      %p109 = scmp.eq.s32.totalorder %s24, 1
      %p110 = por %p108, %p109
      %p111 = scmp.ne.s32.totalorder %s102, %s103
      %p112 = scmp.eq.s32.totalorder %s24, 0
      %p113 = por %p111, %p112
      %p114 = scmp.ne.s32.totalorder %s102, %s103
      %p115 = scmp.eq.s32.totalorder %s25, 1
      %p116 = por %p114, %p115
      %p118 = scmp.ne.s32.totalorder %s103, %s117
      %p119 = scmp.eq.s32.totalorder %s25, 0
      %p120 = por %p118, %p119
      %s121 = ssub.s32 %s19, %s26
      %p122 = scmp.eq.s32.totalorder %s121, 0
      %s124 = sadd.s32 %s123, 1
      %s125 = scalar_select %p122, %s123, %s124
      %p128 = pneg %p122
      %p129 = scmp.eq.s32.totalorder %s19, 1
      %p130 = por %p128, %p129
      %p131 = scmp.ne.s32.totalorder %s123, %s126
      %p132 = scmp.eq.s32.totalorder %s19, 0
      %p133 = por %p131, %p132
      %p134 = scmp.ne.s32.totalorder %s123, %s126
      %p135 = scmp.eq.s32.totalorder %s24, 1
      %p136 = por %p134, %p135
      %p137 = scmp.ne.s32.totalorder %s126, %s127
      %p138 = scmp.eq.s32.totalorder %s24, 0
      %p139 = por %p137, %p138
      %p140 = scmp.ne.s32.totalorder %s126, %s127
      %p141 = scmp.eq.s32.totalorder %s25, 1
      %p142 = por %p140, %p141
      %p144 = scmp.ne.s32.totalorder %s127, %s143
      %p145 = scmp.eq.s32.totalorder %s25, 0
      %p146 = por %p144, %p145
      %p147 = scmp.le.s32.totalorder 1, %s19
      %p148 = scmp.lt.s32.totalorder %s19, 3
      %p149 = pnand %p147, %p148
      %p150 = pneg %p149
      // Predicated region
      $region9: #{tpu_custom_call.1} parent=5 // pred_check
        _
      $region10: #{tpu_custom_call.1} parent=5 // pred_check_branch
        %152 = sbr.rel (%p149) target = $region12
      $region11: #{tpu_custom_call.1} parent=5 // pred_region
        %s153 = ssub.s32 %s19, 1
        // Predicated region
        $region13: #{tpu_custom_call.1} parent=11 // pred_check
          %p154 = pneg %p92
        $region14: #{tpu_custom_call.1} parent=11 // pred_check_branch
          %156 = sbr.rel (%p154) target = $region16
        $region15: #{tpu_custom_call.1} parent=11 // pred_region
          _
        $region16: #{tpu_custom_call.1} parent=11 // pred_fallthru
          _
        // Predicated region
        $region17: #{tpu_custom_call.1} parent=11 // pred_check
          %p157 = pneg %p113
        $region18: #{tpu_custom_call.1} parent=11 // pred_check_branch
          %159 = sbr.rel (%p157) target = $region20
        $region19: #{tpu_custom_call.1} parent=11 // pred_region
          _
        $region20: #{tpu_custom_call.1} parent=11 // pred_fallthru
          _
      $region12: #{tpu_custom_call.1} parent=5 // pred_fallthru
        _
      %p160 = scmp.lt.s32.totalorder %s19, 2
      // Predicated region
      $region21: #{tpu_custom_call.1} parent=5 // pred_check
        %p161 = pneg %p160
      $region22: #{tpu_custom_call.1} parent=5 // pred_check_branch
        %163 = sbr.rel (%p161) target = $region24
      $region23: #{tpu_custom_call.1} parent=5 // pred_region
        // Predicated region
        $region25: #{tpu_custom_call.1} parent=23 // pred_check
          %p164 = pneg %p39
        $region26: #{tpu_custom_call.1} parent=23 // pred_check_branch
          %166 = sbr.rel (%p164) target = $region28
        $region27: #{tpu_custom_call.1} parent=23 // pred_region
          %s167 = sand.u32 %s29, 1
          %s168 = scalar_lea.sflag [#allocation3], %s167
          %s169 = sand.u32 %s29, 1
          %s170 = smul.addr %s169, 128
          %s171 = scalar_lea.vmem [#allocation2], %s170
          %s172 = smul.u32 16, %s19
          %s174 = ssub.s32 2048, 2048
          %175 = vsyncadd %s168, %s174
          %s176 = smul.addr %s172, 128
          %s177 = scalar_lea.hbm %s0, %s176
          %s178 = sshll.u32 %s171, 4
          %s179 = int_to_ptr.vmem [resolvable:$true] %s178
          %184 = dma.hbm_to_vmem [thread:$0]  %s177, 2048, %s179, %s168, 128, 128, 8
        $region28: #{tpu_custom_call.1} parent=23 // pred_fallthru
          _
        // Predicated region
        $region29: #{tpu_custom_call.1} parent=23 // pred_check
          %p185 = pneg %p65
        $region30: #{tpu_custom_call.1} parent=23 // pred_check_branch
          %187 = sbr.rel (%p185) target = $region32
        $region31: #{tpu_custom_call.1} parent=23 // pred_region
          %s188 = sand.u32 %s55, 1
          %s189 = scalar_lea.sflag [#allocation6], %s188
          %s190 = sand.u32 %s55, 1
          %s191 = smul.addr %s190, 128
          %s192 = scalar_lea.vmem [#allocation5], %s191
          %s193 = smul.u32 16, %s19
          %s195 = ssub.s32 2048, 2048
          %196 = vsyncadd %s189, %s195
          %s197 = smul.addr %s193, 128
          %s198 = scalar_lea.hbm %s1, %s197
          %s199 = sshll.u32 %s192, 4
          %s200 = int_to_ptr.vmem [resolvable:$true] %s199
          %205 = dma.hbm_to_vmem [thread:$0]  %s198, 2048, %s200, %s189, 128, 128, 8
        $region32: #{tpu_custom_call.1} parent=23 // pred_fallthru
          _
      $region24: #{tpu_custom_call.1} parent=5 // pred_fallthru
        _
      %p206 = scmp.le.s32.totalorder 1, %s19
      %p207 = scmp.lt.s32.totalorder %s19, 3
      %p208 = pnand %p206, %p207
      %p209 = pneg %p208
      // Predicated region
      $region33: #{tpu_custom_call.1} parent=5 // pred_check
        _
      $region34: #{tpu_custom_call.1} parent=5 // pred_check_branch
        %211 = sbr.rel (%p208) target = $region36
      $region35: #{tpu_custom_call.1} parent=5 // pred_region
        %s212 = ssub.s32 %s19, 1
        %s213 = sand.u32 %s32, 1
        %s214 = scalar_lea.sflag [#allocation3], %s213
        %s215 = sand.u32 %s32, 1
        %s216 = smul.addr %s215, 128
        %s217 = scalar_lea.vmem [#allocation2], %s216
        // Predicated region
        $region37: #{tpu_custom_call.1} parent=35 // pred_check
          %p218 = pneg %p45
        $region38: #{tpu_custom_call.1} parent=35 // pred_check_branch
          %220 = sbr.rel (%p218) target = $region40
        $region39: #{tpu_custom_call.1} parent=35 // pred_region
          %221 = dma.done %s214, 2048
        $region40: #{tpu_custom_call.1} parent=35 // pred_fallthru
          _
        %s222 = sand.u32 %s58, 1
        %s223 = scalar_lea.sflag [#allocation6], %s222
        %s224 = sand.u32 %s58, 1
        %s225 = smul.addr %s224, 128
        %s226 = scalar_lea.vmem [#allocation5], %s225
        // Predicated region
        $region41: #{tpu_custom_call.1} parent=35 // pred_check
          %p227 = pneg %p71
        $region42: #{tpu_custom_call.1} parent=35 // pred_check_branch
          %229 = sbr.rel (%p227) target = $region44
        $region43: #{tpu_custom_call.1} parent=35 // pred_region
          %230 = dma.done %s223, 2048
        $region44: #{tpu_custom_call.1} parent=35 // pred_fallthru
          _
        %s231 = sand.u32 %s32, 1
        %s232 = scalar_lea.sflag [#allocation3], %s231
        %s233 = sand.u32 %s32, 1
        %s234 = smul.addr %s233, 128
        %s235 = scalar_lea.vmem [#allocation2], %s234
        %p236 = pneg %p45
        %p237 = pneg %p42
        %s238 = sand.u32 %s58, 1
        %s239 = scalar_lea.sflag [#allocation6], %s238
        %s240 = sand.u32 %s58, 1
        %s241 = smul.addr %s240, 128
        %s242 = scalar_lea.vmem [#allocation5], %s241
        %p243 = pneg %p71
        %p244 = pneg %p68
        %p245 = pneg %p92
        %p246 = pneg %p89
        %p247 = pneg %p113
        %p248 = pneg %p110
        %p249 = pneg %p139
        %p250 = pneg %p136
        %s251 = sand.u32 %s126, 1
        %s252 = scalar_lea.sflag [#allocation4], %s251
        %s253 = sand.u32 %s126, 1
        %s254 = smul.addr %s253, 128
        %s255 = scalar_lea.vmem [#allocation7], %s254
        %s256 = smul.u32 16, %s24
        %s257 = smul.u32 16, %s24
        %s258 = smul.u32 16, %s24
        %v259 = vld [vmem:[%s226] sm:$0xff]
        %v260 = vld [vmem:[%s226 + $0x8] sm:$0xff]
        %v261 = vld [vmem:[%s226 + $0x10] sm:$0xff]
        %v262 = vld [vmem:[%s226 + $0x18] sm:$0xff]
        %v263 = vld [vmem:[%s226 + $0x20] sm:$0xff]
        %v264 = vld [vmem:[%s226 + $0x28] sm:$0xff]
        %v265 = vld [vmem:[%s226 + $0x30] sm:$0xff]
        %v266 = vld [vmem:[%s226 + $0x38] sm:$0xff]
        %v267 = vld [vmem:[%s226 + $0x40] sm:$0xff]
        %v268 = vld [vmem:[%s226 + $0x48] sm:$0xff]
        %v269 = vld [vmem:[%s226 + $0x50] sm:$0xff]
        %v270 = vld [vmem:[%s226 + $0x58] sm:$0xff]
        %v271 = vld [vmem:[%s226 + $0x60] sm:$0xff]
        %v272 = vld [vmem:[%s226 + $0x68] sm:$0xff]
        %v273 = vld [vmem:[%s226 + $0x70] sm:$0xff]
        %v274 = vld [vmem:[%s226 + $0x78] sm:$0xff]
        %v275 = vld [vmem:[%s217] sm:$0xff]
        %v276 = vld [vmem:[%s217 + $0x8] sm:$0xff]
        %v277 = vld [vmem:[%s217 + $0x10] sm:$0xff]
        %v278 = vld [vmem:[%s217 + $0x18] sm:$0xff]
        %v279 = vld [vmem:[%s217 + $0x20] sm:$0xff]
        %v280 = vld [vmem:[%s217 + $0x28] sm:$0xff]
        %v281 = vld [vmem:[%s217 + $0x30] sm:$0xff]
        %v282 = vld [vmem:[%s217 + $0x38] sm:$0xff]
        %v283 = vld [vmem:[%s217 + $0x40] sm:$0xff]
        %v284 = vld [vmem:[%s217 + $0x48] sm:$0xff]
        %v285 = vld [vmem:[%s217 + $0x50] sm:$0xff]
        %v286 = vld [vmem:[%s217 + $0x58] sm:$0xff]
        %v287 = vld [vmem:[%s217 + $0x60] sm:$0xff]
        %v288 = vld [vmem:[%s217 + $0x68] sm:$0xff]
        %v289 = vld [vmem:[%s217 + $0x70] sm:$0xff]
        %v290 = vld [vmem:[%s217 + $0x78] sm:$0xff]
        %v291 = vadd.f32 %v259, %v275
        %v292 = vadd.f32 %v260, %v276
        %v293 = vadd.f32 %v261, %v277
        %v294 = vadd.f32 %v262, %v278
        %v295 = vadd.f32 %v263, %v279
        %v296 = vadd.f32 %v264, %v280
        %v297 = vadd.f32 %v265, %v281
        %v298 = vadd.f32 %v266, %v282
        %v299 = vadd.f32 %v267, %v283
        %v300 = vadd.f32 %v268, %v284
        %v301 = vadd.f32 %v269, %v285
        %v302 = vadd.f32 %v270, %v286
        %v303 = vadd.f32 %v271, %v287
        %v304 = vadd.f32 %v272, %v288
        %v305 = vadd.f32 %v273, %v289
        %v306 = vadd.f32 %v274, %v290
        %307 = vadd.xlane.f32.xlu0 %v291
        %v308 = vpop.xlane.xlu0 %307
        %309 = vadd.xlane.f32.xlu0 %v292
        %v310 = vpop.xlane.xlu0 %309
        %311 = vadd.xlane.f32.xlu0 %v293
        %v312 = vpop.xlane.xlu0 %311
        %313 = vadd.xlane.f32.xlu0 %v294
        %v314 = vpop.xlane.xlu0 %313
        %315 = vadd.xlane.f32.xlu0 %v295
        %v316 = vpop.xlane.xlu0 %315
        %317 = vadd.xlane.f32.xlu0 %v296
        %v318 = vpop.xlane.xlu0 %317
        %319 = vadd.xlane.f32.xlu0 %v297
        %v320 = vpop.xlane.xlu0 %319
        %321 = vadd.xlane.f32.xlu0 %v298
        %v322 = vpop.xlane.xlu0 %321
        %323 = vadd.xlane.f32.xlu0 %v299
        %v324 = vpop.xlane.xlu0 %323
        %325 = vadd.xlane.f32.xlu0 %v300
        %v326 = vpop.xlane.xlu0 %325
        %327 = vadd.xlane.f32.xlu0 %v301
        %v328 = vpop.xlane.xlu0 %327
        %329 = vadd.xlane.f32.xlu0 %v302
        %v330 = vpop.xlane.xlu0 %329
        %331 = vadd.xlane.f32.xlu0 %v303
        %v332 = vpop.xlane.xlu0 %331
        %333 = vadd.xlane.f32.xlu0 %v304
        %v334 = vpop.xlane.xlu0 %333
        %335 = vadd.xlane.f32.xlu0 %v305
        %v336 = vpop.xlane.xlu0 %335
        %337 = vadd.xlane.f32.xlu0 %v306
        %v338 = vpop.xlane.xlu0 %337
        %v339 = vrcp.pop 128.0
        %v340 = vmul.f32 %v308, %v339
        %v341 = vmul.f32 %v310, %v339
        %v342 = vmul.f32 %v312, %v339
        %v343 = vmul.f32 %v314, %v339
        %v344 = vmul.f32 %v316, %v339
        %v345 = vmul.f32 %v318, %v339
        %v346 = vmul.f32 %v320, %v339
        %v347 = vmul.f32 %v322, %v339
        %v348 = vmul.f32 %v324, %v339
        %v349 = vmul.f32 %v326, %v339
        %v350 = vmul.f32 %v328, %v339
        %v351 = vmul.f32 %v330, %v339
        %v352 = vmul.f32 %v332, %v339
        %v353 = vmul.f32 %v334, %v339
        %v354 = vmul.f32 %v336, %v339
        %v355 = vmul.f32 %v338, %v339
        %v356 = vsub.f32 %v291, %v340
        %v357 = vsub.f32 %v292, %v341
        %v358 = vsub.f32 %v293, %v342
        %v359 = vsub.f32 %v294, %v343
        %v360 = vsub.f32 %v295, %v344
        %v361 = vsub.f32 %v296, %v345
        %v362 = vsub.f32 %v297, %v346
        %v363 = vsub.f32 %v298, %v347
        %v364 = vsub.f32 %v299, %v348
        %v365 = vsub.f32 %v300, %v349
        %v366 = vsub.f32 %v301, %v350
        %v367 = vsub.f32 %v302, %v351
        %v368 = vsub.f32 %v303, %v352
        %v369 = vsub.f32 %v304, %v353
        %v370 = vsub.f32 %v305, %v354
        %v371 = vsub.f32 %v306, %v355
        %v372 = vmul.f32 %v356, %v356
        %v373 = vmul.f32 %v357, %v357
        %v374 = vmul.f32 %v358, %v358
        %v375 = vmul.f32 %v359, %v359
        %v376 = vmul.f32 %v360, %v360
        %v377 = vmul.f32 %v361, %v361
        %v378 = vmul.f32 %v362, %v362
        %v379 = vmul.f32 %v363, %v363
        %v380 = vmul.f32 %v364, %v364
        %v381 = vmul.f32 %v365, %v365
        %v382 = vmul.f32 %v366, %v366
        %v383 = vmul.f32 %v367, %v367
        %v384 = vmul.f32 %v368, %v368
        %v385 = vmul.f32 %v369, %v369
        %v386 = vmul.f32 %v370, %v370
        %v387 = vmul.f32 %v371, %v371
        %388 = vadd.xlane.f32.xlu0 %v372
        %v389 = vpop.xlane.xlu0 %388
        %390 = vadd.xlane.f32.xlu0 %v373
        %v391 = vpop.xlane.xlu0 %390
        %392 = vadd.xlane.f32.xlu0 %v374
        %v393 = vpop.xlane.xlu0 %392
        %394 = vadd.xlane.f32.xlu0 %v375
        %v395 = vpop.xlane.xlu0 %394
        %396 = vadd.xlane.f32.xlu0 %v376
        %v397 = vpop.xlane.xlu0 %396
        %398 = vadd.xlane.f32.xlu0 %v377
        %v399 = vpop.xlane.xlu0 %398
        %400 = vadd.xlane.f32.xlu0 %v378
        %v401 = vpop.xlane.xlu0 %400
        %402 = vadd.xlane.f32.xlu0 %v379
        %v403 = vpop.xlane.xlu0 %402
        %404 = vadd.xlane.f32.xlu0 %v380
        %v405 = vpop.xlane.xlu0 %404
        %406 = vadd.xlane.f32.xlu0 %v381
        %v407 = vpop.xlane.xlu0 %406
        %408 = vadd.xlane.f32.xlu0 %v382
        %v409 = vpop.xlane.xlu0 %408
        %410 = vadd.xlane.f32.xlu0 %v383
        %v411 = vpop.xlane.xlu0 %410
        %412 = vadd.xlane.f32.xlu0 %v384
        %v413 = vpop.xlane.xlu0 %412
        %414 = vadd.xlane.f32.xlu0 %v385
        %v415 = vpop.xlane.xlu0 %414
        %416 = vadd.xlane.f32.xlu0 %v386
        %v417 = vpop.xlane.xlu0 %416
        %418 = vadd.xlane.f32.xlu0 %v387
        %v419 = vpop.xlane.xlu0 %418
        %v420 = vmul.f32 %v389, %v339
        %v421 = vmul.f32 %v391, %v339
        %v422 = vmul.f32 %v393, %v339
        %v423 = vmul.f32 %v395, %v339
        %v424 = vmul.f32 %v397, %v339
        %v425 = vmul.f32 %v399, %v339
        %v426 = vmul.f32 %v401, %v339
        %v427 = vmul.f32 %v403, %v339
        %v428 = vmul.f32 %v405, %v339
        %v429 = vmul.f32 %v407, %v339
        %v430 = vmul.f32 %v409, %v339
        %v431 = vmul.f32 %v411, %v339
        %v432 = vmul.f32 %v413, %v339
        %v433 = vmul.f32 %v415, %v339
        %v434 = vmul.f32 %v417, %v339
        %v435 = vmul.f32 %v419, %v339
        %v436 = vadd.f32 %v420, 1e-05
        %v437 = vadd.f32 %v421, 1e-05
        %v438 = vadd.f32 %v422, 1e-05
        %v439 = vadd.f32 %v423, 1e-05
        %v440 = vadd.f32 %v424, 1e-05
        %v441 = vadd.f32 %v425, 1e-05
        %v442 = vadd.f32 %v426, 1e-05
        %v443 = vadd.f32 %v427, 1e-05
        %v444 = vadd.f32 %v428, 1e-05
        %v445 = vadd.f32 %v429, 1e-05
        %v446 = vadd.f32 %v430, 1e-05
        %v447 = vadd.f32 %v431, 1e-05
        %v448 = vadd.f32 %v432, 1e-05
        %v449 = vadd.f32 %v433, 1e-05
        %v450 = vadd.f32 %v434, 1e-05
        %v451 = vadd.f32 %v435, 1e-05
        %v452 = vrsqrt.pop %v436
        %v453 = vrsqrt.pop %v437
        %v454 = vrsqrt.pop %v438
        %v455 = vrsqrt.pop %v439
        %v456 = vrsqrt.pop %v440
        %v457 = vrsqrt.pop %v441
        %v458 = vrsqrt.pop %v442
        %v459 = vrsqrt.pop %v443
        %v460 = vrsqrt.pop %v444
        %v461 = vrsqrt.pop %v445
        %v462 = vrsqrt.pop %v446
        %v463 = vrsqrt.pop %v447
        %v464 = vrsqrt.pop %v448
        %v465 = vrsqrt.pop %v449
        %v466 = vrsqrt.pop %v450
        %v467 = vrsqrt.pop %v451
        %v468 = vmul.f32 %v356, %v452
        %v469 = vmul.f32 %v357, %v453
        %v470 = vmul.f32 %v358, %v454
        %v471 = vmul.f32 %v359, %v455
        %v472 = vmul.f32 %v360, %v456
        %v473 = vmul.f32 %v361, %v457
        %v474 = vmul.f32 %v362, %v458
        %v475 = vmul.f32 %v363, %v459
        %v476 = vmul.f32 %v364, %v460
        %v477 = vmul.f32 %v365, %v461
        %v478 = vmul.f32 %v366, %v462
        %v479 = vmul.f32 %v367, %v463
        %v480 = vmul.f32 %v368, %v464
        %v481 = vmul.f32 %v369, %v465
        %v482 = vmul.f32 %v370, %v466
        %v483 = vmul.f32 %v371, %v467
        %v484 = vld [vmem:[%s2] sm:$0x1]
        %v486 = vlaneseq
        %v487 = vshrl.u32 %v486, 7
        %v488 = vsub.s32 0, %v487
        %v489 = vrot.slane %v484, %v488
        %v491 = vmul.f32 %v468, %v489
        %v492 = vmul.f32 %v469, %v489
        %v493 = vmul.f32 %v470, %v489
        %v494 = vmul.f32 %v471, %v489
        %v495 = vmul.f32 %v472, %v489
        %v496 = vmul.f32 %v473, %v489
        %v497 = vmul.f32 %v474, %v489
        %v498 = vmul.f32 %v475, %v489
        %v499 = vmul.f32 %v476, %v489
        %v500 = vmul.f32 %v477, %v489
        %v501 = vmul.f32 %v478, %v489
        %v502 = vmul.f32 %v479, %v489
        %v503 = vmul.f32 %v480, %v489
        %v504 = vmul.f32 %v481, %v489
        %v505 = vmul.f32 %v482, %v489
        %v506 = vmul.f32 %v483, %v489
        %v507 = vld [vmem:[%s3] sm:$0x1]
        %v509 = vlaneseq
        %v510 = vshrl.u32 %v509, 7
        %v511 = vsub.s32 0, %v510
        %v512 = vrot.slane %v507, %v511
        %v514 = vadd.f32 %v491, %v512
        %v515 = vadd.f32 %v492, %v512
        %v516 = vadd.f32 %v493, %v512
        %v517 = vadd.f32 %v494, %v512
        %v518 = vadd.f32 %v495, %v512
        %v519 = vadd.f32 %v496, %v512
        %v520 = vadd.f32 %v497, %v512
        %v521 = vadd.f32 %v498, %v512
        %v522 = vadd.f32 %v499, %v512
        %v523 = vadd.f32 %v500, %v512
        %v524 = vadd.f32 %v501, %v512
        %v525 = vadd.f32 %v502, %v512
        %v526 = vadd.f32 %v503, %v512
        %v527 = vadd.f32 %v504, %v512
        %v528 = vadd.f32 %v505, %v512
        %v529 = vadd.f32 %v506, %v512
        %530 = vst [vmem:[%s255] sm:$0xff] %v514
        %531 = vst [vmem:[%s255 + $0x8] sm:$0xff] %v515
        %532 = vst [vmem:[%s255 + $0x10] sm:$0xff] %v516
        %533 = vst [vmem:[%s255 + $0x18] sm:$0xff] %v517
        %534 = vst [vmem:[%s255 + $0x20] sm:$0xff] %v518
        %535 = vst [vmem:[%s255 + $0x28] sm:$0xff] %v519
        %536 = vst [vmem:[%s255 + $0x30] sm:$0xff] %v520
        %537 = vst [vmem:[%s255 + $0x38] sm:$0xff] %v521
        %538 = vst [vmem:[%s255 + $0x40] sm:$0xff] %v522
        %539 = vst [vmem:[%s255 + $0x48] sm:$0xff] %v523
        %540 = vst [vmem:[%s255 + $0x50] sm:$0xff] %v524
        %541 = vst [vmem:[%s255 + $0x58] sm:$0xff] %v525
        %542 = vst [vmem:[%s255 + $0x60] sm:$0xff] %v526
        %543 = vst [vmem:[%s255 + $0x68] sm:$0xff] %v527
        %544 = vst [vmem:[%s255 + $0x70] sm:$0xff] %v528
        %545 = vst [vmem:[%s255 + $0x78] sm:$0xff] %v529
        %s546 = sand.u32 %s126, 1
        %s547 = scalar_lea.sflag [#allocation4], %s546
        %s548 = sand.u32 %s126, 1
        %s549 = smul.addr %s548, 128
        %s550 = scalar_lea.vmem [#allocation7], %s549
        // Predicated region
        $region45: #{tpu_custom_call.1} parent=35 // pred_check
          %p551 = pneg %p136
        $region46: #{tpu_custom_call.1} parent=35 // pred_check_branch
          %553 = sbr.rel (%p551) target = $region48
        $region47: #{tpu_custom_call.1} parent=35 // pred_region
          %s554 = smul.u32 16, %s24
          %s556 = ssub.s32 2048, 2048
          %557 = vsyncadd %s547, %s556
          %s558 = smul.addr %s554, 128
          %s559 = scalar_lea.hbm %s4, %s558
          %s560 = sshll.u32 %s550, 4
          %s561 = int_to_ptr.vmem [resolvable:$true] %s560
          %566 = dma.vmem_to_hbm [thread:$0]  %s561, 2048, %s559, %s547, 128, 128, 8
        $region48: #{tpu_custom_call.1} parent=35 // pred_fallthru
          _
      $region36: #{tpu_custom_call.1} parent=5 // pred_fallthru
        _
      %p567 = scmp.le.s32.totalorder 2, %s19
      // Predicated region
      $region49: #{tpu_custom_call.1} parent=5 // pred_check
        %p568 = pneg %p567
      $region50: #{tpu_custom_call.1} parent=5 // pred_check_branch
        %570 = sbr.rel (%p568) target = $region52
      $region51: #{tpu_custom_call.1} parent=5 // pred_region
        %s571 = ssub.s32 %s19, 2
        // Predicated region
        $region53: #{tpu_custom_call.1} parent=51 // pred_check
          %p572 = pneg %p142
        $region54: #{tpu_custom_call.1} parent=51 // pred_check_branch
          %574 = sbr.rel (%p572) target = $region56
        $region55: #{tpu_custom_call.1} parent=51 // pred_region
          %s575 = sand.u32 %s127, 1
          %s576 = scalar_lea.sflag [#allocation4], %s575
          %s577 = sand.u32 %s127, 1
          %s578 = smul.addr %s577, 128
          %s579 = scalar_lea.vmem [#allocation7], %s578
          %580 = dma.done %s576, 2048
        $region56: #{tpu_custom_call.1} parent=51 // pred_fallthru
          _
      $region52: #{tpu_custom_call.1} parent=5 // pred_fallthru
        _
    $region6: #{tpu_custom_call.1} parent=1 // loop_footer
      %s23 = sadd.s32 1, %s19
    $region7: #{tpu_custom_call.1} parent=1 // loop_footer_branch
      %18 = sbr.rel target = $region3
    $region8: #{tpu_custom_call.1} parent=1 // loop_exit
      _
    %581 = vsyncpa [#allocation3], 1
    %s582 = scalar_lea.sflag [#allocation3], 1
    %583 = vsyncpa %s582, 1
    %584 = vsyncpa [#allocation6], 1
    %s585 = scalar_lea.sflag [#allocation6], 1
    %586 = vsyncpa %s585, 1
    %587 = vsyncpa [#allocation4], 1
    %s588 = scalar_lea.sflag [#allocation4], 1
    %589 = vsyncpa %s588, 1

</llo_original>
